<compile_context>
chip_gen: v5e
topology: v5e:2x2
jax: 0.10.0
libtpu: 0.0.40
codegen_flags: <defaults>
</compile_context>

<pallas_src>
import functools

import jax
import jax.numpy as jnp
from jax.experimental import pallas as pl
from jax.experimental.pallas import tpu as pltpu


# ----------------------------------------------------------------------------
# Path 1: small table -> VMEM-resident table, one-hot matmul gather on the MXU.
# ----------------------------------------------------------------------------
def _onehot_gather_kernel(ids_ref, emb_ref, out_ref):
    rows = out_ref.shape[0]
    vocab = emb_ref.shape[0]
    ids = ids_ref[...]                                        # (rows, 1) int32
    iota = jax.lax.broadcasted_iota(jnp.int32, (rows, vocab), 1)
    onehot = (iota == ids).astype(emb_ref.dtype)              # exact 0 / 1
    # Note: an id outside [0, vocab) produces an all-zero one-hot row (zeros
    # out), instead of nn.Embedding's index error.
    out_ref[...] = jnp.dot(
        onehot, emb_ref[...], preferred_element_type=jnp.float32
    ).astype(out_ref.dtype)


def _word_embedding_vmem(ids_flat, emb_mat, n):
    vocab, emb_dim = emb_mat.shape
    # Cap rows so the in-kernel (rows, vocab) one-hot stays around <= 2 MiB.
    max_rows = max(8, min(1024, (2 * 1024 * 1024) // max(1, vocab * 4)))
    rows, n_pad = _pick_rows_per_block(n, max_rows)
    if n_pad != n:
        ids_flat = jnp.pad(ids_flat, (0, n_pad - n))
    ids_col = ids_flat.reshape(n_pad, 1)

    out = pl.pallas_call(
        _onehot_gather_kernel,
        out_shape=jax.ShapeDtypeStruct((n_pad, emb_dim), emb_mat.dtype),
        grid=(n_pad // rows,),
        in_specs=[
            pl.BlockSpec((rows, 1), lambda i: (i, 0)),          # ids block
            pl.BlockSpec((vocab, emb_dim), lambda i: (0, 0)),   # whole table
        ],
        out_specs=pl.BlockSpec((rows, emb_dim), lambda i: (i, 0)),
        compiler_params=pltpu.CompilerParams(
            dimension_semantics=("parallel",)),
    )(ids_col, emb_mat)
    return out if n_pad == n else out[:n]


# ----------------------------------------------------------------------------
# Path 2: large table -> HBM-resident table, per-row DMA gather.
# ----------------------------------------------------------------------------
def _dma_gather_kernel(ids_ref, emb_hbm, out_ref, sem, *, rows_per_block):
    base = pl.program_id(0) * rows_per_block
    unroll = min(8, rows_per_block)

    def issue(r, carry):
        row = ids_ref[base + r]                    # scalar read from SMEM
        pltpu.make_async_copy(
            emb_hbm.at[pl.ds(row, 1), :],          # (1, E) row of HBM table
            out_ref.at[pl.ds(r, 1), :],            # (1, E) slot of this block
            sem,                                   # single shared DMA sem
        ).start()
        return carry

    # Issue all row copies first so they overlap, then drain once.
    jax.lax.fori_loop(0, rows_per_block, issue, 0, unroll=unroll)

    def drain(r, carry):
        # Every copy is (1, E) and signals the shared sem; any matching
        # descriptor retires one of them.
        pltpu.make_async_copy(
            emb_hbm.at[pl.ds(0, 1), :],
            out_ref.at[pl.ds(0, 1), :],
            sem,
        ).wait()
        return carry

    jax.lax.fori_loop(0, rows_per_block, drain, 0, unroll=unroll)


def _word_embedding_hbm_gather(ids_flat, emb_mat, n, rows_per_block):
    vocab, emb_dim = emb_mat.shape
    dtype_bytes = emb_mat.dtype.itemsize
    # Double-buffered output block kept within ~12 MiB -> safe under the
    # default scoped VMEM limits of v5e (16 MiB), v6e (32 MiB), v7x (32 MiB).
    max_rows = max(
        8, min(rows_per_block, (12 * 1024 * 1024) // max(1, 2 * emb_dim * dtype_bytes))
    )
    rows, n_pad = _pick_rows_per_block(n, max_rows)
    if n_pad != n:
        ids_flat = jnp.pad(ids_flat, (0, n_pad - n))
    # Clamp so a bad id never turns into an OOB HBM DMA (hard chip fault).
    ids_flat = jnp.clip(ids_flat, 0, vocab - 1)

    # TODO(synk): for very large bs*T, block the ids per grid step instead of
    # scalar-prefetching the whole array into SMEM.
    out = pl.pallas_call(
        functools.partial(_dma_gather_kernel, rows_per_block=rows),
        out_shape=jax.ShapeDtypeStruct((n_pad, emb_dim), emb_mat.dtype),
        grid_spec=pltpu.PrefetchScalarGridSpec(
            num_scalar_prefetch=1,                          # ids -> SMEM
            grid=(n_pad // rows,),
            in_specs=[pl.BlockSpec(memory_space=pl.ANY)],   # table stays in HBM
            out_specs=pl.BlockSpec((rows, emb_dim), lambda i, ids: (i, 0)),
            scratch_shapes=[pltpu.SemaphoreType.DMA],       # one shared sem
        ),
        compiler_params=pltpu.CompilerParams(
            dimension_semantics=("parallel",),
            vmem_limit_bytes=32 * 1024 * 1024),
    )(ids_flat, emb_mat)
    return out if n_pad == n else out[:n]


# ----------------------------------------------------------------------------
# Wrapper
# ----------------------------------------------------------------------------
def _pick_rows_per_block(n, max_rows):
    """Rows per grid step; prefer covering n exactly (no padding, no slice)."""
    max_rows = max(8, min(max_rows, n))
    if n <= max_rows:
        return n, n                       # one block == full dim (allowed)
    r = (max_rows // 8) * 8
    while r >= 8:                         # largest multiple of 8 dividing n
        if n % r == 0:
            return r, n
        r -= 8
    r = (max_rows // 8) * 8               # fallback: pad + slice tail off
    n_pad = pl.cdiv(n, r) * r
    return r, n_pad


def word_embedding(ids, emb_mat, *, rows_per_block=256,
                   table_vmem_budget_bytes=4 * 1024 * 1024,
                   force_hbm_gather=False):
    """Eval-mode WordEmbedding.forward: (bs, T) int ids -> (bs, T, E) floats."""
    bs, seq = ids.shape
    vocab, emb_dim = emb_mat.shape
    n = bs * seq
    ids_flat = ids.reshape(n).astype(jnp.int32)

    table_bytes = vocab * emb_dim * emb_mat.dtype.itemsize
    if table_bytes <= table_vmem_budget_bytes and not force_hbm_gather:
        out = _word_embedding_vmem(ids_flat, emb_mat, n)
    else:
        out = _word_embedding_hbm_gather(ids_flat, emb_mat, n, rows_per_block)
    return out.reshape(bs, seq, emb_dim)


if __name__ == "__main__":
    bs, T = 2, 8           # (batch, seqlen) token ids
    vocab, E = 50, 32      # w2v.n_vocabs, w2v.n_embfactors

    key = jax.random.PRNGKey(0)
    k_emb, k_ids = jax.random.split(key)
    emb_mat = jax.random.uniform(k_emb, (vocab, E), jnp.float32, -1.0, 1.0)
    # bf16-representable values keep the one-hot-MXU path bit-exact vs. the
    # pure-JAX reference regardless of how the compiler splits the f32 matmul.
    emb_mat = emb_mat.astype(jnp.bfloat16).astype(jnp.float32)
    ids = jax.random.randint(k_ids, (bs, T), 0, vocab, dtype=jnp.int32)

    ref = emb_mat[ids]                     # pure-JAX reference (eval forward)

    # Small-table fast path (VMEM table + one-hot MXU gather).
    out = jax.block_until_ready(word_embedding(ids, emb_mat))
    assert out.shape == (bs, T, E)
    assert out.dtype == emb_mat.dtype
    assert jnp.array_equal(out, ref)

    # Large-table path (HBM table + per-row DMA gather), forced for coverage.
    out_gather = jax.block_until_ready(
        word_embedding(ids, emb_mat, force_hbm_gather=True))
    assert out_gather.shape == (bs, T, E)
    assert jnp.array_equal(out_gather, ref)

    print("KERNEL_OK")
</pallas_src>

<mosaic_0001>
module attributes {stable_mosaic.version = 11 : i64} {
  func.func @_onehot_gather_kernel(%arg0: i32, %arg1: memref<16x1xi32, #tpu.memory_space<vmem>>, %arg2: memref<50x32xf32, #tpu.memory_space<vmem>>, %arg3: memref<16x32xf32, #tpu.memory_space<vmem>>) attributes {dimension_semantics = [#tpu.dimension_semantics<parallel>], iteration_bounds = array<i64: 1>, scalar_prefetch = 0 : i64, scratch_operands = 0 : i64, tpu.core_type = #tpu.core_type<tc>, window_params = [{transform_indices = @transform_0, window_bounds = array<i64: 16, 1>}, {pipeline_mode = #tpu.pipeline_mode<synchronous>, transform_indices = @transform_1, window_bounds = array<i64: 50, 32>}, {transform_indices = @transform_2, window_bounds = array<i64: 16, 32>}]} {
    %c0 = arith.constant 0 : index
    %c0_0 = arith.constant 0 : index
    %0 = vector.load %arg1[%c0, %c0_0] : memref<16x1xi32, #tpu.memory_space<vmem>>, vector<16x1xi32>
    %1 = tpu.iota {dimensions = array<i32: 1>} : vector<16x50xi32>
    %2 = vector.broadcast %0 : vector<16x1xi32> to vector<16x50xi32>
    %3 = arith.cmpi eq, %1, %2 : vector<16x50xi32>
    %4 = arith.extui %3 : vector<16x50xi1> to vector<16x50xi32>
    %5 = arith.sitofp %4 : vector<16x50xi32> to vector<16x50xf32>
    %c0_1 = arith.constant 0 : index
    %c0_2 = arith.constant 0 : index
    %6 = vector.load %arg2[%c0_1, %c0_2] : memref<50x32xf32, #tpu.memory_space<vmem>>, vector<50x32xf32>
    %cst = arith.constant dense<0.000000e+00> : vector<16x32xf32>
    %7 = tpu.matmul %5, %6, %cst {dimension_numbers = #tpu.dot_dimension_numbers<[1], [0], [0], [1], [0, 0, 1, 1], [], []>} : vector<16x50xf32>, vector<50x32xf32>, vector<16x32xf32> -> vector<16x32xf32>
    %c0_3 = arith.constant 0 : index
    %c0_4 = arith.constant 0 : index
    %8 = vector.load %arg3[%c0_3, %c0_4] : memref<16x32xf32, #tpu.memory_space<vmem>>, vector<16x32xf32>
    tpu.vector_store %arg3[%c0_3, %c0_4], %7 {strides = array<i32>} : memref<16x32xf32, #tpu.memory_space<vmem>>, vector<16x32xf32>,
    return
  }
  func.func @transform_0(%arg0: i32) -> (i32, i32) {
    %c0_i32 = arith.constant 0 : i32
    %c0_i32_0 = arith.constant 0 : i32
    return %arg0, %c0_i32 : i32, i32
  }
  func.func @transform_1(%arg0: i32) -> (i32, i32) {
    %c0_i32 = arith.constant 0 : i32
    %c0_i32_0 = arith.constant 0 : i32
    %c0_i32_1 = arith.constant 0 : i32
    return %c0_i32, %c0_i32_0 : i32, i32
  }
  func.func @transform_2(%arg0: i32) -> (i32, i32) {
    %c0_i32 = arith.constant 0 : i32
    %c0_i32_0 = arith.constant 0 : i32
    return %arg0, %c0_i32 : i32, i32
  }
}

</mosaic_0001>

<llo_original>
// kernel: tpu_custom_call.1
$region0: #{tpu_custom_call.1}
  #allocation0 [shape = 'u32[]', space=smem, size = 0x4, offset = 0x4, fixed_abs, tag = 'smem constant byte address 0x4 - core index']
  #allocation1 [shape = 'u32[72,128]{1,0:T(1,128)}', space=vmem, size = 0x9000, scoped, tag = 'internal scratch']
  %s0 = inlined_call_operand.vmem [shape: s32[16,1], index: 0, kind: input, shape index: {}]
  %s1 = inlined_call_operand.vmem [shape: f32[50,32], index: 1, kind: input, shape index: {}]
  %s2 = inlined_call_operand.hbm [shape: f32[16,32], index: 2, kind: output, shape index: {}]
  %s3 = sld [smem:[#allocation0]]
  $region18: #{tpu_custom_call.1} parent=0
    _
  %s5 = ssub.s32 1, %s3
  %s6 = scalar_select 0, %s5, %s3
  $region1: #{tpu_custom_call.1} parent=0
    #allocation2 [shape = 'u8[8192]{0}', space=vmem, size = 0x2000, scoped, tag = 'output window, operand 0, single buffered']
    #allocation3 [shape = 's32[1]{0}', space=sflag, size = 0x4, scoped, tag = 'scoped memory for tpu_custom_call.1']
    %7 = vsyncpa [#allocation3], 0
    // Predicated region
    $region2: #{tpu_custom_call.1} parent=1 // pred_check
      _
    $region3: #{tpu_custom_call.1} parent=1 // pred_check_branch
      %9 = sbr.rel (0) target = $region5
    $region4: #{tpu_custom_call.1} parent=1 // pred_region
      _
    $region5: #{tpu_custom_call.1} parent=1 // pred_fallthru
      _
    // Predicated region
    $region6: #{tpu_custom_call.1} parent=1 // pred_check
      _
    $region7: #{tpu_custom_call.1} parent=1 // pred_check_branch
      %11 = sbr.rel (0) target = $region9
    $region8: #{tpu_custom_call.1} parent=1 // pred_region
      _
    $region9: #{tpu_custom_call.1} parent=1 // pred_fallthru
      _
    %v12 = vld [vmem:[%s0] sm:$0xff]
    %v13 = vld [vmem:[%s0 + $0x8] sm:$0xff]
    %v14 = vlaneseq
    %v15 = vand.u32 %v14, 127
    %16 = vset.pattern.permute.xlu0 0
    %17 = vperm.xlu0 %16, %v12
    %v18 = vpop.permute.xlu0 %17
    %19 = vset.pattern.permute.xlu0 0
    %20 = vperm.xlu0 %19, %v13
    %v21 = vpop.permute.xlu0 %20
    %vm22 = vcmp.eq.s32.totalorder %v15, %v18
    %vm23 = vcmp.eq.s32.totalorder %v15, %v21
    %v24 = vsel %vm22, 1, 0
    %v25 = vsel %vm23, 1, 0
    %v26 = vcvt.s32.f32 %v24
    %v27 = vcvt.s32.f32 %v25
    %v28 = vld [vmem:[%s1] sm:$0xff]
    %v29 = vld [vmem:[%s1 + $0x8] sm:$0xff]
    %v30 = vld [vmem:[%s1 + $0x10] sm:$0xff]
    %v31 = vld [vmem:[%s1 + $0x18] sm:$0xff]
    %v32 = vld [vmem:[%s1 + $0x20] sm:$0xff]
    %v33 = vld [vmem:[%s1 + $0x28] sm:$0xff]
    %v34 = vld [vmem:[%s1 + $0x30] sm:$0x3]
    %vm35 = vcmask 408576
    %v37 = vsel %vm35, %v26, 0
    %v40 = vsel %vm35, %v27, 0
    %vm42 = vcmask 1041408
    %v44 = vsel %vm42, %v34, 0
    %46 = vmatpush.msra.mxu0 0.0
    %47 = vmatpush.msra.mxu0 0.0
    %48 = vmatpush.msra.mxu0 0.0
    %49 = vmatpush.msra.mxu0 0.0
    %50 = vmatpush.msra.mxu0 0.0
    %51 = vmatpush.msra.mxu0 0.0
    %52 = vmatpush.msra.mxu0 0.0
    %53 = vmatpush.msra.mxu0 0.0
    %54 = vmatpush.msra.mxu0 0.0
    %55 = vmatpush.msra.mxu0 %v44
    %56 = vmatpush.msra.mxu0 %v33
    %57 = vmatpush.msra.mxu0 %v32
    %58 = vmatpush.msra.mxu0 %v31
    %59 = vmatpush.msra.mxu0 %v30
    %60 = vmatpush.msra.mxu0 %v29
    %61 = vmatpush.msra.mxu0 %v28
    %62 = vmatmul.f32.gmra.mxu0 %v37
    %v63 = vpop.f32.mrf.mxu0
    %v64 = vadd.f32 0.0, %v63
    %65 = vmatmul.f32.gmra.mxu0 %v40
    %v66 = vpop.f32.mrf.mxu0
    %v67 = vadd.f32 0.0, %v66
    %68 = vdwg.mxu0
    %vm69 = vcmask 261120
    %70 = vst.msk [vmem:[#allocation2] sm:$0xff] %vm69, %v64
    %71 = vst.msk [vmem:[#allocation2 + $0x8] sm:$0xff] %vm69, %v67
    // Predicated region
    $region10: #{tpu_custom_call.1} parent=1 // pred_check
      _
    $region11: #{tpu_custom_call.1} parent=1 // pred_check_branch
      %73 = sbr.rel (0) target = $region13
    $region12: #{tpu_custom_call.1} parent=1 // pred_region
      %75 = vsyncadd [#allocation3], 0
      %s76 = sshll.u32 [#allocation2], 4
      %s77 = int_to_ptr.vmem [resolvable:$true] %s76
      %s78 = sshll.u32 %s2, 4
      %s79 = int_to_ptr.hbm [resolvable:$true] %s78
      %84 = dma.vmem_to_hbm [thread:$0]  %s77, 256, %s79, [#allocation3], 128, 128, 8
    $region13: #{tpu_custom_call.1} parent=1 // pred_fallthru
      _
    // Predicated region
    $region14: #{tpu_custom_call.1} parent=1 // pred_check
      _
    $region15: #{tpu_custom_call.1} parent=1 // pred_check_branch
      %86 = sbr.rel (0) target = $region17
    $region16: #{tpu_custom_call.1} parent=1 // pred_region
      %88 = dma.done [#allocation3], 256
    $region17: #{tpu_custom_call.1} parent=1 // pred_fallthru
      _
    %89 = vsyncpa [#allocation3], 1

</llo_original>
